<compile_context>
chip_gen: v6e
topology: v6e:2x2x1
jax: 0.10.0
libtpu: 0.0.40
codegen_flags: <defaults>
</compile_context>

<pallas_src>
import functools
from math import sqrt

import jax
import jax.numpy as jnp
from jax import lax
from jax.experimental import pallas as pl
from jax.experimental.pallas import tpu as pltpu


# ----------------------------------------------------------------------------- kernels


def qkv_proj_kernel(x_ref, w_ref, b_ref, q_ref, k_ref, v_ref, *, d_k, scale):
    # x_ref block:   (1, tq, D)            bf16
    # w_ref block:   (H, D, 3*d_k)         bf16, resident (constant index_map)
    # b_ref block:   (H, 1, 3*d_k)         f32,  resident
    # outputs:       (1, 1, tq, d_k) each, (B, H, S, d_k) layout
    h = pl.program_id(2)
    x = x_ref[0]                                            # (tq, D)
    w = w_ref[h]                                            # (D, 3*d_k)
    b = b_ref[h]                                            # (1, 3*d_k)

    qkv = jnp.dot(x, w, preferred_element_type=jnp.float32) + b   # (tq, 3*d_k) f32

    # Fold the 1/sqrt(d_k) scale into Q here (S*d_k elements, not S*S).
    q_ref[0, 0] = (qkv[:, :d_k] * scale).astype(q_ref.dtype)
    k_ref[0, 0] = qkv[:, d_k:2 * d_k].astype(k_ref.dtype)
    v_ref[0, 0] = qkv[:, 2 * d_k:].astype(v_ref.dtype)


def flash_attn_kernel(q_ref, k_ref, v_ref, wo_ref, bo_ref, o_ref,
                      m_scr, l_scr, ctx_scr, out_scr):
    # grid = (batch, q_tile, head, kv_tile); head/kv are reduction ("arbitrary") axes.
    h = pl.program_id(2)
    ki = pl.program_id(3)
    nh = pl.num_programs(2)
    nk = pl.num_programs(3)

    @pl.when(jnp.logical_and(h == 0, ki == 0))
    def _():
        out_scr[...] = jnp.zeros_like(out_scr)              # (tq, D) f32 accumulator

    @pl.when(ki == 0)
    def _():
        m_scr[...] = jnp.full_like(m_scr, -jnp.inf)
        l_scr[...] = jnp.zeros_like(l_scr)
        ctx_scr[...] = jnp.zeros_like(ctx_scr)

    q = q_ref[0, 0]                 # (tq, d_k)  bf16, pre-scaled by 1/sqrt(d_k)
    k = k_ref[0, 0]                 # (tkv, d_k) bf16
    v = v_ref[0, 0]                 # (tkv, d_k) bf16

    # scores = q @ k^T, contracting the last dims (no in-kernel transpose of k).
    s = lax.dot_general(q, k, (((1,), (1,)), ((), ())),
                        preferred_element_type=jnp.float32)  # (tq, tkv) f32

    m_prev = m_scr[...]
    m_new = jnp.maximum(m_prev, jnp.max(s, axis=-1, keepdims=True))
    alpha = jnp.exp(m_prev - m_new)
    p = jnp.exp(s - m_new)
    l_scr[...] = alpha * l_scr[...] + jnp.sum(p, axis=-1, keepdims=True)
    ctx_scr[...] = alpha * ctx_scr[...] + jnp.dot(
        p.astype(v.dtype), v, preferred_element_type=jnp.float32)
    m_scr[...] = m_new

    # End of this head's kv loop: normalize and fold the head straight into the
    # output projection (no lane concat of head outputs).  wo_ref is the full
    # resident (H, d_k, D) weight; select the head by a leading-axis index.
    @pl.when(ki == nk - 1)
    def _():
        inv_l = pl.reciprocal(l_scr[...])                    # exact (epilogue-only cost)
        ctx = (ctx_scr[...] * inv_l).astype(wo_ref.dtype)    # (tq, d_k) bf16
        out_scr[...] += jnp.dot(ctx, wo_ref[h],
                                preferred_element_type=jnp.float32)

    @pl.when(jnp.logical_and(h == nh - 1, ki == nk - 1))
    def _():
        o_ref[0] = (out_scr[...] + bo_ref[...]).astype(o_ref.dtype)


# ----------------------------------------------------------------------------- wrapper


def _pick_tile(n, pref):
    """Largest power-of-two tile <= pref dividing n (multiple of 8), else full n."""
    if n <= pref:
        return n
    t = pref
    while t >= 8:
        if n % t == 0:
            return t
        t //= 2
    return n


def multi_headed_attention(x, params, num_heads, *, tq=None, tkv=None):
    B, S, D = x.shape
    assert D % num_heads == 0
    d_k = D // num_heads
    # Larger default tiles: amortize grid-step overhead, fill 256-wide MXU (v6e/v7x).
    tq = _pick_tile(S, 256) if tq is None else tq
    tkv = _pick_tile(S, 512) if tkv is None else tkv
    assert S % tq == 0 and S % tkv == 0
    nq, nkv = S // tq, S // tkv
    scale = 1.0 / sqrt(d_k)

    # One-time layout plumbing outside the kernels.
    x_bf = x.astype(jnp.bfloat16)                            # cast once, not per step

    def head_major(w_t):                                     # (D, D) -> (H, D, d_k)
        return w_t.reshape(D, num_heads, d_k).transpose(1, 0, 2)

    # Fused per-head QKV weight (H, D, 3*d_k) and bias (H, 1, 3*d_k).
    w_qkv = jnp.concatenate(
        [head_major(params["wq_t"]), head_major(params["wk_t"]),
         head_major(params["wv_t"])], axis=-1).astype(jnp.bfloat16)
    b_qkv = jnp.concatenate(
        [params["bq"].reshape(num_heads, 1, d_k),
         params["bk"].reshape(num_heads, 1, d_k),
         params["bv"].reshape(num_heads, 1, d_k)], axis=-1)  # f32

    wo = params["wo_t"].reshape(num_heads, d_k, D).astype(jnp.bfloat16)
    bo = params["bo"]                                        # (1, D) f32

    vmem_limit = 48 * 1024 * 1024        # safe on v7x (64 MiB physical) and below

    # ---- kernel 1: fused per-head QKV projection ------------------------------
    qkv_out_spec = pl.BlockSpec((1, 1, tq, d_k), lambda b, qi, h: (b, h, qi, 0))
    cost1 = pl.CostEstimate(
        flops=2 * B * S * D * 3 * D,
        transcendentals=0,
        bytes_accessed=(B * S * D * 2                        # x (bf16)
                        + D * 3 * D * 2 + 3 * D * 4          # fused weights + bias
                        + 3 * B * S * D * 2))                # Q/K/V outputs (bf16)

    q, k, v = pl.pallas_call(
        functools.partial(qkv_proj_kernel, d_k=d_k, scale=scale),
        out_shape=(jax.ShapeDtypeStruct((B, num_heads, S, d_k), jnp.bfloat16),) * 3,
        grid=(B, nq, num_heads),
        in_specs=[
            pl.BlockSpec((1, tq, D), lambda b, qi, h: (b, qi, 0)),               # x
            pl.BlockSpec((num_heads, D, 3 * d_k), lambda b, qi, h: (0, 0, 0)),   # W_qkv (resident)
            pl.BlockSpec((num_heads, 1, 3 * d_k), lambda b, qi, h: (0, 0, 0)),   # b_qkv (resident)
        ],
        out_specs=(qkv_out_spec,) * 3,
        compiler_params=pltpu.CompilerParams(
            dimension_semantics=("parallel", "parallel", "parallel"),
            vmem_limit_bytes=vmem_limit),
        cost_estimate=cost1,
    )(x_bf, w_qkv, b_qkv)

    # ---- kernel 2: flash attention + fused output projection ------------------
    cost2 = pl.CostEstimate(
        flops=4 * B * S * S * D + 2 * B * S * D * D,
        transcendentals=B * num_heads * S * S,
        bytes_accessed=(B * S * D * 2                        # Q (bf16)
                        + 2 * nq * B * S * D * 2             # K/V re-streamed per q-tile
                        + D * D * 2 + D * 4                  # Wo, bo (resident)
                        + B * S * D * x.dtype.itemsize))     # output

    out = pl.pallas_call(
        flash_attn_kernel,
        out_shape=jax.ShapeDtypeStruct((B, S, D), x.dtype),
        grid=(B, nq, num_heads, nkv),
        in_specs=[
            pl.BlockSpec((1, 1, tq, d_k), lambda b, qi, h, ki: (b, h, qi, 0)),   # q
            pl.BlockSpec((1, 1, tkv, d_k), lambda b, qi, h, ki: (b, h, ki, 0)),  # k
            pl.BlockSpec((1, 1, tkv, d_k), lambda b, qi, h, ki: (b, h, ki, 0)),  # v
            pl.BlockSpec((num_heads, d_k, D), lambda b, qi, h, ki: (0, 0, 0)),   # Wo (resident)
            pl.BlockSpec((1, D), lambda b, qi, h, ki: (0, 0)),                   # bo (resident)
        ],
        out_specs=pl.BlockSpec((1, tq, D), lambda b, qi, h, ki: (b, qi, 0)),
        scratch_shapes=[
            pltpu.VMEM((tq, 1), jnp.float32),     # running max m
            pltpu.VMEM((tq, 1), jnp.float32),     # running denom l
            pltpu.VMEM((tq, d_k), jnp.float32),   # per-head context accumulator
            pltpu.VMEM((tq, D), jnp.float32),     # output-projection accumulator
        ],
        compiler_params=pltpu.CompilerParams(
            dimension_semantics=("parallel", "parallel", "arbitrary", "arbitrary"),
            vmem_limit_bytes=vmem_limit),
        cost_estimate=cost2,
    )(q, k, v, wo, bo)

    return out


# ----------------------------------------------------------------------------- reference


def reference_mha(x, params, num_heads):
    """Pure-JAX f32 reference mirroring the PyTorch module (eval mode, no mask)."""
    B, S, D = x.shape
    d_k = D // num_heads

    def linear(t, w_t, b):
        return t @ w_t + b

    q = linear(x, params["wq_t"], params["bq"]).reshape(B, S, num_heads, d_k).transpose(0, 2, 1, 3)
    k = linear(x, params["wk_t"], params["bk"]).reshape(B, S, num_heads, d_k).transpose(0, 2, 1, 3)
    v = linear(x, params["wv_t"], params["bv"]).reshape(B, S, num_heads, d_k).transpose(0, 2, 1, 3)

    scores = jnp.einsum("bhqd,bhkd->bhqk", q, k) / sqrt(d_k)
    p = jax.nn.softmax(scores, axis=-1)
    ctx = jnp.einsum("bhqk,bhkd->bhqd", p, v).transpose(0, 2, 1, 3).reshape(B, S, D)
    return linear(ctx, params["wo_t"], params["bo"])


def init_params(key, d_model):
    """Deterministic init mimicking nn.Linear's uniform(-1/sqrt(in), 1/sqrt(in))."""
    bound = 1.0 / sqrt(d_model)
    ks = jax.random.split(key, 8)

    def lin(kw, kb):
        w = jax.random.uniform(kw, (d_model, d_model), jnp.float32, -bound, bound)  # (out, in)
        b = jax.random.uniform(kb, (d_model,), jnp.float32, -bound, bound)
        return w, b

    wq, bq = lin(ks[0], ks[1])
    wk, bk = lin(ks[2], ks[3])
    wv, bv = lin(ks[4], ks[5])
    wo, bo = lin(ks[6], ks[7])

    return {
        "wq_t": wq.T, "bq": bq.reshape(1, d_model),
        "wk_t": wk.T, "bk": bk.reshape(1, d_model),
        "wv_t": wv.T, "bv": bv.reshape(1, d_model),
        "wo_t": wo.T, "bo": bo.reshape(1, d_model),
    }


if __name__ == "__main__":
    B, S, D, H = 2, 16, 32, 4  # batch, seq, d_model, heads (d_k = 8)

    key = jax.random.PRNGKey(0)
    kp, kx = jax.random.split(key)
    params = init_params(kp, D)
    x = jax.random.normal(kx, (B, S, D), jnp.float32)

    # Small explicit tiles so the multi-tile accumulation paths (nq=2, nkv=2) are
    # exercised even at toy shapes; defaults (tq=256, tkv=512) kick in for real sizes.
    out = multi_headed_attention(x, params, H, tq=8, tkv=8)
    out = jax.block_until_ready(out)

    ref = reference_mha(x, params, H)
    assert out.shape == (B, S, D)
    # bf16 matmuls (f32 accumulation) inside the kernels vs pure-f32 reference.
    assert jnp.allclose(out, ref, rtol=2e-2, atol=2e-2), "mismatch vs reference"

    print("KERNEL_OK")
</pallas_src>

<mosaic_0001>
module attributes {stable_mosaic.version = 11 : i64} {
  func.func @qkv_proj_kernel(%arg0: i32, %arg1: i32, %arg2: i32, %arg3: memref<1x8x32xbf16, #tpu.memory_space<vmem>>, %arg4: memref<4x32x24xbf16, #tpu.memory_space<vmem>>, %arg5: memref<4x1x24xf32, #tpu.memory_space<vmem>>, %arg6: memref<1x1x8x8xbf16, #tpu.memory_space<vmem>>, %arg7: memref<1x1x8x8xbf16, #tpu.memory_space<vmem>>, %arg8: memref<1x1x8x8xbf16, #tpu.memory_space<vmem>>) attributes {dimension_semantics = [#tpu.dimension_semantics<parallel>, #tpu.dimension_semantics<parallel>, #tpu.dimension_semantics<parallel>], iteration_bounds = array<i64: 2, 2, 4>, scalar_prefetch = 0 : i64, scratch_operands = 0 : i64, tpu.core_type = #tpu.core_type<tc>, window_params = [{transform_indices = @transform_0, window_bounds = array<i64: 1, 8, 32>}, {pipeline_mode = #tpu.pipeline_mode<synchronous>, transform_indices = @transform_1, window_bounds = array<i64: 4, 32, 24>}, {pipeline_mode = #tpu.pipeline_mode<synchronous>, transform_indices = @transform_2, window_bounds = array<i64: 4, 1, 24>}, {transform_indices = @transform_3, window_bounds = array<i64: 1, 1, 8, 8>}, {transform_indices = @transform_4, window_bounds = array<i64: 1, 1, 8, 8>}, {transform_indices = @transform_5, window_bounds = array<i64: 1, 1, 8, 8>}]} {
    %c0 = arith.constant 0 : index
    %c0_0 = arith.constant 0 : index
    %c0_1 = arith.constant 0 : index
    %0 = vector.load %arg3[%c0, %c0_0, %c0_1] : memref<1x8x32xbf16, #tpu.memory_space<vmem>>, vector<1x8x32xbf16>
    %1 = vector.shape_cast %0 : vector<1x8x32xbf16> to vector<8x32xbf16>
    %2 = arith.index_cast %arg2 : i32 to index
    %c0_2 = arith.constant 0 : index
    %c0_3 = arith.constant 0 : index
    %3 = vector.load %arg4[%2, %c0_2, %c0_3] : memref<4x32x24xbf16, #tpu.memory_space<vmem>>, vector<1x32x24xbf16>
    %4 = vector.shape_cast %3 : vector<1x32x24xbf16> to vector<32x24xbf16>
    %5 = arith.index_cast %arg2 : i32 to index
    %c0_4 = arith.constant 0 : index
    %c0_5 = arith.constant 0 : index
    %6 = vector.load %arg5[%5, %c0_4, %c0_5] : memref<4x1x24xf32, #tpu.memory_space<vmem>>, vector<1x1x24xf32>
    %7 = vector.shape_cast %6 : vector<1x1x24xf32> to vector<1x24xf32>
    %cst = arith.constant dense<0.000000e+00> : vector<8x24xf32>
    %8 = tpu.matmul %1, %4, %cst {dimension_numbers = #tpu.dot_dimension_numbers<[1], [0], [0], [1], [0, 0, 1, 1], [], []>} : vector<8x32xbf16>, vector<32x24xbf16>, vector<8x24xf32> -> vector<8x24xf32>
    %9 = vector.broadcast %7 : vector<1x24xf32> to vector<8x24xf32>
    %10 = arith.addf %8, %9 : vector<8x24xf32>
    %11 = vector.extract_strided_slice %10 {offsets = [0, 0], sizes = [8, 8], strides = [1, 1]} : vector<8x24xf32> to vector<8x8xf32>
    %cst_6 = arith.constant 0.353553385 : f32
    %12 = vector.broadcast %cst_6 : f32 to vector<8x8xf32>
    %13 = arith.mulf %11, %12 : vector<8x8xf32>
    %14 = arith.truncf %13 : vector<8x8xf32> to vector<8x8xbf16>
    %c0_7 = arith.constant 0 : index
    %c0_8 = arith.constant 0 : index
    %c0_9 = arith.constant 0 : index
    %c0_10 = arith.constant 0 : index
    %15 = vector.load %arg6[%c0_7, %c0_8, %c0_9, %c0_10] : memref<1x1x8x8xbf16, #tpu.memory_space<vmem>>, vector<1x1x8x8xbf16>
    %16 = vector.shape_cast %15 : vector<1x1x8x8xbf16> to vector<8x8xbf16>
    %17 = vector.shape_cast %14 : vector<8x8xbf16> to vector<1x1x8x8xbf16>
    tpu.vector_store %arg6[%c0_7, %c0_8, %c0_9, %c0_10], %17 {strides = array<i32>} : memref<1x1x8x8xbf16, #tpu.memory_space<vmem>>, vector<1x1x8x8xbf16>,
    %18 = vector.extract_strided_slice %10 {offsets = [0, 8], sizes = [8, 8], strides = [1, 1]} : vector<8x24xf32> to vector<8x8xf32>
    %19 = arith.truncf %18 : vector<8x8xf32> to vector<8x8xbf16>
    %c0_11 = arith.constant 0 : index
    %c0_12 = arith.constant 0 : index
    %c0_13 = arith.constant 0 : index
    %c0_14 = arith.constant 0 : index
    %20 = vector.load %arg7[%c0_11, %c0_12, %c0_13, %c0_14] : memref<1x1x8x8xbf16, #tpu.memory_space<vmem>>, vector<1x1x8x8xbf16>
    %21 = vector.shape_cast %20 : vector<1x1x8x8xbf16> to vector<8x8xbf16>
    %22 = vector.shape_cast %19 : vector<8x8xbf16> to vector<1x1x8x8xbf16>
    tpu.vector_store %arg7[%c0_11, %c0_12, %c0_13, %c0_14], %22 {strides = array<i32>} : memref<1x1x8x8xbf16, #tpu.memory_space<vmem>>, vector<1x1x8x8xbf16>,
    %23 = vector.extract_strided_slice %10 {offsets = [0, 16], sizes = [8, 8], strides = [1, 1]} : vector<8x24xf32> to vector<8x8xf32>
    %24 = arith.truncf %23 : vector<8x8xf32> to vector<8x8xbf16>
    %c0_15 = arith.constant 0 : index
    %c0_16 = arith.constant 0 : index
    %c0_17 = arith.constant 0 : index
    %c0_18 = arith.constant 0 : index
    %25 = vector.load %arg8[%c0_15, %c0_16, %c0_17, %c0_18] : memref<1x1x8x8xbf16, #tpu.memory_space<vmem>>, vector<1x1x8x8xbf16>
    %26 = vector.shape_cast %25 : vector<1x1x8x8xbf16> to vector<8x8xbf16>
    %27 = vector.shape_cast %24 : vector<8x8xbf16> to vector<1x1x8x8xbf16>
    tpu.vector_store %arg8[%c0_15, %c0_16, %c0_17, %c0_18], %27 {strides = array<i32>} : memref<1x1x8x8xbf16, #tpu.memory_space<vmem>>, vector<1x1x8x8xbf16>,
    return
  }
  func.func @transform_0(%arg0: i32, %arg1: i32, %arg2: i32) -> (i32, i32, i32) {
    %c0_i32 = arith.constant 0 : i32
    %c0_i32_0 = arith.constant 0 : i32
    return %arg0, %arg1, %c0_i32 : i32, i32, i32
  }
  func.func @transform_1(%arg0: i32, %arg1: i32, %arg2: i32) -> (i32, i32, i32) {
    %c0_i32 = arith.constant 0 : i32
    %c0_i32_0 = arith.constant 0 : i32
    %c0_i32_1 = arith.constant 0 : i32
    %c0_i32_2 = arith.constant 0 : i32
    return %c0_i32, %c0_i32_0, %c0_i32_1 : i32, i32, i32
  }
  func.func @transform_2(%arg0: i32, %arg1: i32, %arg2: i32) -> (i32, i32, i32) {
    %c0_i32 = arith.constant 0 : i32
    %c0_i32_0 = arith.constant 0 : i32
    %c0_i32_1 = arith.constant 0 : i32
    %c0_i32_2 = arith.constant 0 : i32
    return %c0_i32, %c0_i32_0, %c0_i32_1 : i32, i32, i32
  }
  func.func @transform_3(%arg0: i32, %arg1: i32, %arg2: i32) -> (i32, i32, i32, i32) {
    %c0_i32 = arith.constant 0 : i32
    %c0_i32_0 = arith.constant 0 : i32
    return %arg0, %arg2, %arg1, %c0_i32 : i32, i32, i32, i32
  }
  func.func @transform_4(%arg0: i32, %arg1: i32, %arg2: i32) -> (i32, i32, i32, i32) {
    %c0_i32 = arith.constant 0 : i32
    %c0_i32_0 = arith.constant 0 : i32
    return %arg0, %arg2, %arg1, %c0_i32 : i32, i32, i32, i32
  }
  func.func @transform_5(%arg0: i32, %arg1: i32, %arg2: i32) -> (i32, i32, i32, i32) {
    %c0_i32 = arith.constant 0 : i32
    %c0_i32_0 = arith.constant 0 : i32
    return %arg0, %arg2, %arg1, %c0_i32 : i32, i32, i32, i32
  }
}

</mosaic_0001>

<llo_original>
// kernel: tpu_custom_call.1
$region0: #{tpu_custom_call.1}
  #allocation0 [shape = 'u32[]', space=smem, size = 0x4, offset = 0x4, fixed_abs, tag = 'smem constant byte address 0x4 - core index']
  #allocation1 [shape = 'u32[144,128]{1,0:T(1,128)}', space=vmem, size = 0x12000, scoped, tag = 'internal scratch']
  %s0 = inlined_call_operand.vmem [shape: bf16[2,16,32], index: 0, kind: input, shape index: {}]
  %s1 = inlined_call_operand.vmem [shape: bf16[4,32,24], index: 1, kind: input, shape index: {}]
  %s2 = inlined_call_operand.vmem [shape: f32[4,1,24], index: 2, kind: input, shape index: {}]
  %s3 = inlined_call_operand.vmem [shape: bf16[2,4,16,8], index: 3, kind: output, shape index: {0}]
  %s4 = inlined_call_operand.vmem [shape: bf16[2,4,16,8], index: 4, kind: output, shape index: {1}]
  %s5 = inlined_call_operand.vmem [shape: bf16[2,4,16,8], index: 5, kind: output, shape index: {2}]
  %6 = xla_tuple %s3, %s4, %s5
  %s7 = sld [smem:[#allocation0]]
  $region61: #{tpu_custom_call.1} parent=0
    _
  %s9 = ssub.s32 1, %s7
  %s10 = scalar_select 0, %s9, %s7
  loop: start=0, step=1, limit=18
  $region2: #{tpu_custom_call.1} parent=0 // loop_pre_header
    _
  $region3: #{tpu_custom_call.1} parent=0 // loop_header
    %s12 = sphi 0, %s16
    %p13 = scmp.ge.s32.totalorder %s12, 18
    %s19 = sphi 0, %s38
    %s20 = sphi 0, %s34
    %s21 = sphi 0, %s30
    %s22 = sphi 0, %s19
    %s23 = sphi 0, %s20
    %s24 = sphi 0, %s21
    %s25 = sphi 0, %s22
    %s26 = sphi 0, %s23
    %s27 = sphi 0, %s24
    %s43 = sphi 0, %s45
    %s46 = sphi 0, %s43
    %s47 = sphi 0, %s46
    %s63 = sphi 0, %s47
    %s67 = sphi 0, %s67
    %s69 = sphi 0, %s67
    %s70 = sphi 0, %s69
    %s84 = sphi 0, %s70
    %s88 = sphi 0, %s88
    %s90 = sphi 0, %s88
    %s91 = sphi 0, %s90
    %s105 = sphi 0, %s91
    %s115 = sphi 0, %s117
    %s118 = sphi 0, %s115
    %s119 = sphi 0, %s118
    %s135 = sphi 0, %s119
    %s145 = sphi 0, %s147
    %s148 = sphi 0, %s145
    %s149 = sphi 0, %s148
    %s165 = sphi 0, %s149
    %s175 = sphi 0, %s177
    %s178 = sphi 0, %s175
    %s179 = sphi 0, %s178
    %s195 = sphi 0, %s179
  $region4: #{tpu_custom_call.1} parent=0 // loop_header_branch
    %15 = sbr.rel (%p13) target = $region8
  $region5: #{tpu_custom_call.1} parent=0 // loop_body
    %s17 = ssub.s32 %s12, 1
    %s18 = ssub.s32 %s12, 2
    %s28 = sadd.s32 1, %s21
    %p29 = scmp.ge.s32.totalorder %s28, 4
    %s30 = scalar_select %p29, 0, %s28
    %s31 = sadd.s32 1, %s20
    %s32 = scalar_select %p29, %s31, %s20
    %p33 = scmp.ge.s32.totalorder %s32, 2
    %s34 = scalar_select %p33, 0, %s32
    %s35 = sadd.s32 1, %s19
    %s36 = scalar_select %p33, %s35, %s19
    %p37 = scmp.ge.s32.totalorder %s36, 2
    %s38 = scalar_select %p37, 0, %s36
    %s39 = ssub.s32 %s19, %s38
    %s40 = ssub.s32 %s20, %s34
    %s41 = sor.u32 %s39, %s40
    %p42 = scmp.eq.s32.totalorder %s41, 0
    %s44 = sadd.s32 %s43, 1
    %s45 = scalar_select %p42, %s43, %s44
    %p48 = pneg %p42
    %p49 = scmp.eq.s32.totalorder %s12, 15
    %p50 = por %p48, %p49
    %p51 = scmp.ne.s32.totalorder %s43, %s46
    %p52 = scmp.eq.s32.totalorder %s12, 0
    %p53 = por %p51, %p52
    %p54 = scmp.ne.s32.totalorder %s43, %s46
    %p55 = scmp.eq.s32.totalorder %s17, 15
    %p56 = por %p54, %p55
    %p57 = scmp.ne.s32.totalorder %s46, %s47
    %p58 = scmp.eq.s32.totalorder %s17, 0
    %p59 = por %p57, %p58
    %p60 = scmp.ne.s32.totalorder %s46, %s47
    %p61 = scmp.eq.s32.totalorder %s18, 15
    %p62 = por %p60, %p61
    %p64 = scmp.ne.s32.totalorder %s47, %s63
    %p65 = scmp.eq.s32.totalorder %s18, 0
    %p66 = por %p64, %p65
    %s68 = sadd.s32 %s67, 1
    %p71 = scmp.eq.s32.totalorder %s12, 15
    %p72 = scmp.ne.s32.totalorder %s67, %s69
    %p73 = scmp.eq.s32.totalorder %s12, 0
    %p74 = por %p72, %p73
    %p75 = scmp.ne.s32.totalorder %s67, %s69
    %p76 = scmp.eq.s32.totalorder %s17, 15
    %p77 = por %p75, %p76
    %p78 = scmp.ne.s32.totalorder %s69, %s70
    %p79 = scmp.eq.s32.totalorder %s17, 0
    %p80 = por %p78, %p79
    %p81 = scmp.ne.s32.totalorder %s69, %s70
    %p82 = scmp.eq.s32.totalorder %s18, 15
    %p83 = por %p81, %p82
    %p85 = scmp.ne.s32.totalorder %s70, %s84
    %p86 = scmp.eq.s32.totalorder %s18, 0
    %p87 = por %p85, %p86
    %s89 = sadd.s32 %s88, 1
    %p92 = scmp.eq.s32.totalorder %s12, 15
    %p93 = scmp.ne.s32.totalorder %s88, %s90
    %p94 = scmp.eq.s32.totalorder %s12, 0
    %p95 = por %p93, %p94
    %p96 = scmp.ne.s32.totalorder %s88, %s90
    %p97 = scmp.eq.s32.totalorder %s17, 15
    %p98 = por %p96, %p97
    %p99 = scmp.ne.s32.totalorder %s90, %s91
    %p100 = scmp.eq.s32.totalorder %s17, 0
    %p101 = por %p99, %p100
    %p102 = scmp.ne.s32.totalorder %s90, %s91
    %p103 = scmp.eq.s32.totalorder %s18, 15
    %p104 = por %p102, %p103
    %p106 = scmp.ne.s32.totalorder %s91, %s105
    %p107 = scmp.eq.s32.totalorder %s18, 0
    %p108 = por %p106, %p107
    %s109 = ssub.s32 %s19, %s38
    %s110 = ssub.s32 %s21, %s30
    %s111 = sor.u32 %s109, %s110
    %s112 = ssub.s32 %s20, %s34
    %s113 = sor.u32 %s111, %s112
    %p114 = scmp.eq.s32.totalorder %s113, 0
    %s116 = sadd.s32 %s115, 1
    %s117 = scalar_select %p114, %s115, %s116
    %p120 = pneg %p114
    %p121 = scmp.eq.s32.totalorder %s12, 15
    %p122 = por %p120, %p121
    %p123 = scmp.ne.s32.totalorder %s115, %s118
    %p124 = scmp.eq.s32.totalorder %s12, 0
    %p125 = por %p123, %p124
    %p126 = scmp.ne.s32.totalorder %s115, %s118
    %p127 = scmp.eq.s32.totalorder %s17, 15
    %p128 = por %p126, %p127
    %p129 = scmp.ne.s32.totalorder %s118, %s119
    %p130 = scmp.eq.s32.totalorder %s17, 0
    %p131 = por %p129, %p130
    %p132 = scmp.ne.s32.totalorder %s118, %s119
    %p133 = scmp.eq.s32.totalorder %s18, 15
    %p134 = por %p132, %p133
    %p136 = scmp.ne.s32.totalorder %s119, %s135
    %p137 = scmp.eq.s32.totalorder %s18, 0
    %p138 = por %p136, %p137
    %s139 = ssub.s32 %s19, %s38
    %s140 = ssub.s32 %s21, %s30
    %s141 = sor.u32 %s139, %s140
    %s142 = ssub.s32 %s20, %s34
    %s143 = sor.u32 %s141, %s142
    %p144 = scmp.eq.s32.totalorder %s143, 0
    %s146 = sadd.s32 %s145, 1
    %s147 = scalar_select %p144, %s145, %s146
    %p150 = pneg %p144
    %p151 = scmp.eq.s32.totalorder %s12, 15
    %p152 = por %p150, %p151
    %p153 = scmp.ne.s32.totalorder %s145, %s148
    %p154 = scmp.eq.s32.totalorder %s12, 0
    %p155 = por %p153, %p154
    %p156 = scmp.ne.s32.totalorder %s145, %s148
    %p157 = scmp.eq.s32.totalorder %s17, 15
    %p158 = por %p156, %p157
    %p159 = scmp.ne.s32.totalorder %s148, %s149
    %p160 = scmp.eq.s32.totalorder %s17, 0
    %p161 = por %p159, %p160
    %p162 = scmp.ne.s32.totalorder %s148, %s149
    %p163 = scmp.eq.s32.totalorder %s18, 15
    %p164 = por %p162, %p163
    %p166 = scmp.ne.s32.totalorder %s149, %s165
    %p167 = scmp.eq.s32.totalorder %s18, 0
    %p168 = por %p166, %p167
    %s169 = ssub.s32 %s19, %s38
    %s170 = ssub.s32 %s21, %s30
    %s171 = sor.u32 %s169, %s170
    %s172 = ssub.s32 %s20, %s34
    %s173 = sor.u32 %s171, %s172
    %p174 = scmp.eq.s32.totalorder %s173, 0
    %s176 = sadd.s32 %s175, 1
    %s177 = scalar_select %p174, %s175, %s176
    %p180 = pneg %p174
    %p181 = scmp.eq.s32.totalorder %s12, 15
    %p182 = por %p180, %p181
    %p183 = scmp.ne.s32.totalorder %s175, %s178
    %p184 = scmp.eq.s32.totalorder %s12, 0
    %p185 = por %p183, %p184
    %p186 = scmp.ne.s32.totalorder %s175, %s178
    %p187 = scmp.eq.s32.totalorder %s17, 15
    %p188 = por %p186, %p187
    %p189 = scmp.ne.s32.totalorder %s178, %s179
    %p190 = scmp.eq.s32.totalorder %s17, 0
    %p191 = por %p189, %p190
    %p192 = scmp.ne.s32.totalorder %s178, %s179
    %p193 = scmp.eq.s32.totalorder %s18, 15
    %p194 = por %p192, %p193
    %p196 = scmp.ne.s32.totalorder %s179, %s195
    %p197 = scmp.eq.s32.totalorder %s18, 0
    %p198 = por %p196, %p197
    %p199 = scmp.le.s32.totalorder 1, %s12
    %p200 = scmp.lt.s32.totalorder %s12, 17
    %p201 = pnand %p199, %p200
    %p202 = pneg %p201
    // Predicated region
    $region9: #{tpu_custom_call.1} parent=5 // pred_check
      _
    $region10: #{tpu_custom_call.1} parent=5 // pred_check_branch
      %204 = sbr.rel (%p201) target = $region12
    $region11: #{tpu_custom_call.1} parent=5 // pred_region
      %s205 = ssub.s32 %s12, 1
      // Predicated region
      $region13: #{tpu_custom_call.1} parent=11 // pred_check
        %p206 = pneg %p80
      $region14: #{tpu_custom_call.1} parent=11 // pred_check_branch
        %208 = sbr.rel (%p206) target = $region16
      $region15: #{tpu_custom_call.1} parent=11 // pred_region
        _
      $region16: #{tpu_custom_call.1} parent=11 // pred_fallthru
        _
      // Predicated region
      $region17: #{tpu_custom_call.1} parent=11 // pred_check
        %p209 = pneg %p101
      $region18: #{tpu_custom_call.1} parent=11 // pred_check_branch
        %211 = sbr.rel (%p209) target = $region20
      $region19: #{tpu_custom_call.1} parent=11 // pred_region
        _
      $region20: #{tpu_custom_call.1} parent=11 // pred_fallthru
        _
    $region12: #{tpu_custom_call.1} parent=5 // pred_fallthru
      _
    %p212 = scmp.lt.s32.totalorder %s12, 16
    // Predicated region
    $region21: #{tpu_custom_call.1} parent=5 // pred_check
      %p213 = pneg %p212
    $region22: #{tpu_custom_call.1} parent=5 // pred_check_branch
      %215 = sbr.rel (%p213) target = $region24
    $region23: #{tpu_custom_call.1} parent=5 // pred_region
      // Predicated region
      $region25: #{tpu_custom_call.1} parent=23 // pred_check
        %p216 = pneg %p53
      $region26: #{tpu_custom_call.1} parent=23 // pred_check_branch
        %218 = sbr.rel (%p216) target = $region28
      $region27: #{tpu_custom_call.1} parent=23 // pred_region
        %p219 = scmp.lt.s32.totalorder %s19, 1
        %s220 = scalar_select %p219, %s19, 1
        %p221 = scmp.lt.s32.totalorder %s20, 1
        %s222 = scalar_select %p221, %s20, 1
        %s223 = smul.addr %s220, 2
        %s224 = sadd.s32 %s222, %s223
        %s225 = smul.addr %s224, 4
        %s226 = scalar_lea.vmem %s0, %s225
      $region28: #{tpu_custom_call.1} parent=23 // pred_fallthru
        _
    $region24: #{tpu_custom_call.1} parent=5 // pred_fallthru
      _
    %p227 = scmp.le.s32.totalorder 1, %s12
    %p228 = scmp.lt.s32.totalorder %s12, 17
    %p229 = pnand %p227, %p228
    %p230 = pneg %p229
    // Predicated region
    $region29: #{tpu_custom_call.1} parent=5 // pred_check
      _
    $region30: #{tpu_custom_call.1} parent=5 // pred_check_branch
      %232 = sbr.rel (%p229) target = $region32
    $region31: #{tpu_custom_call.1} parent=5 // pred_region
      %s233 = ssub.s32 %s12, 1
      %p234 = scmp.lt.s32.totalorder %s22, 1
      %s235 = scalar_select %p234, %s22, 1
      %p236 = scmp.lt.s32.totalorder %s23, 1
      %s237 = scalar_select %p236, %s23, 1
      %s238 = smul.addr %s235, 2
      %s239 = sadd.s32 %s237, %s238
      %s240 = smul.addr %s239, 4
      %s241 = scalar_lea.vmem %s0, %s240
      %p242 = pneg %p59
      %p243 = pneg %p56
      %p244 = pneg %p80
      %p245 = pneg %p77
      %p246 = pneg %p101
      %p247 = pneg %p98
      %p248 = pneg %p131
      %p249 = pneg %p128
      %p250 = scmp.lt.s32.totalorder %s22, 1
      %s251 = scalar_select %p250, %s22, 1
      %p252 = scmp.lt.s32.totalorder %s24, 3
      %s253 = scalar_select %p252, %s24, 3
      %p254 = scmp.lt.s32.totalorder %s23, 1
      %s255 = scalar_select %p254, %s23, 1
      %s256 = smul.addr %s253, 2
      %s257 = sadd.s32 %s255, %s256
      %s258 = smul.addr %s251, 8
      %s259 = sadd.s32 %s257, %s258
      %s260 = smul.addr %s259, 4
      %s261 = scalar_lea.vmem %s3, %s260
      %p262 = pneg %p161
      %p263 = pneg %p158
      %p264 = scmp.lt.s32.totalorder %s22, 1
      %s265 = scalar_select %p264, %s22, 1
      %p266 = scmp.lt.s32.totalorder %s24, 3
      %s267 = scalar_select %p266, %s24, 3
      %p268 = scmp.lt.s32.totalorder %s23, 1
      %s269 = scalar_select %p268, %s23, 1
      %s270 = smul.addr %s267, 2
      %s271 = sadd.s32 %s269, %s270
      %s272 = smul.addr %s265, 8
      %s273 = sadd.s32 %s271, %s272
      %s274 = smul.addr %s273, 4
      %s275 = scalar_lea.vmem %s4, %s274
      %p276 = pneg %p191
      %p277 = pneg %p188
      %p278 = scmp.lt.s32.totalorder %s22, 1
      %s279 = scalar_select %p278, %s22, 1
      %p280 = scmp.lt.s32.totalorder %s24, 3
      %s281 = scalar_select %p280, %s24, 3
      %p282 = scmp.lt.s32.totalorder %s23, 1
      %s283 = scalar_select %p282, %s23, 1
      %s284 = smul.addr %s281, 2
      %s285 = sadd.s32 %s283, %s284
      %s286 = smul.addr %s279, 8
      %s287 = sadd.s32 %s285, %s286
      %s288 = smul.addr %s287, 4
      %s289 = scalar_lea.vmem %s5, %s288
      %p290 = scmp.lt.s32.totalorder %s22, 1
      %s291 = scalar_select %p290, %s22, 1
      %p292 = scmp.lt.s32.totalorder %s23, 1
      %s293 = scalar_select %p292, %s23, 1
      %s294 = smul.addr %s291, 2
      %s295 = sadd.s32 %s293, %s294
      %s296 = smul.addr %s295, 4
      %s297 = scalar_lea.vmem %s0, %s296
      %p298 = scmp.lt.s32.totalorder %s22, 1
      %s299 = scalar_select %p298, %s22, 1
      %p300 = scmp.lt.s32.totalorder %s24, 3
      %s301 = scalar_select %p300, %s24, 3
      %p302 = scmp.lt.s32.totalorder %s23, 1
      %s303 = scalar_select %p302, %s23, 1
      %s304 = smul.addr %s301, 2
      %s305 = sadd.s32 %s303, %s304
      %s306 = smul.addr %s299, 8
      %s307 = sadd.s32 %s305, %s306
      %s308 = smul.addr %s307, 4
      %s309 = scalar_lea.vmem %s3, %s308
      %p310 = scmp.lt.s32.totalorder %s22, 1
      %s311 = scalar_select %p310, %s22, 1
      %p312 = scmp.lt.s32.totalorder %s24, 3
      %s313 = scalar_select %p312, %s24, 3
      %p314 = scmp.lt.s32.totalorder %s23, 1
      %s315 = scalar_select %p314, %s23, 1
      %s316 = smul.addr %s313, 2
      %s317 = sadd.s32 %s315, %s316
      %s318 = smul.addr %s311, 8
      %s319 = sadd.s32 %s317, %s318
      %s320 = smul.addr %s319, 4
      %s321 = scalar_lea.vmem %s4, %s320
      %p322 = scmp.lt.s32.totalorder %s22, 1
      %s323 = scalar_select %p322, %s22, 1
      %p324 = scmp.lt.s32.totalorder %s24, 3
      %s325 = scalar_select %p324, %s24, 3
      %p326 = scmp.lt.s32.totalorder %s23, 1
      %s327 = scalar_select %p326, %s23, 1
      %s328 = smul.addr %s325, 2
      %s329 = sadd.s32 %s327, %s328
      %s330 = smul.addr %s323, 8
      %s331 = sadd.s32 %s329, %s330
      %s332 = smul.addr %s331, 4
      %s333 = scalar_lea.vmem %s5, %s332
      %v335 = vld [vmem:[%s297] sm:$0xf]
      %s336 = smul.u32 %s24, 4
      %s337 = smul.addr %s336, 4
      %s338 = scalar_lea.vmem %s1, %s337
      %v339 = vld [vmem:[%s338] sm:$0xf]
      %v340 = vld [vmem:[%s338 + $0x4] sm:$0xf]
      %v341 = vld [vmem:[%s338 + $0x8] sm:$0xf]
      %v342 = vld [vmem:[%s338 + $0xc] sm:$0xf]
      %s343 = scalar_lea.vmem %s2, %s24
      %v344 = vld [vmem:[%s343] sm:$0x1]
      %v346 = vlaneseq
      %v347 = vshrl.u32 %v346, 7
      %v348 = vsub.s32 0, %v347
      %v349 = vrot.slane %v344, %v348
      %v355 = vunpack.c.l.b16 %v339
      %v356 = vunpack.c.l.b16 %v340
      %v357 = vunpack.c.l.b16 %v341
      %v358 = vunpack.c.l.b16 %v342
      %v359 = vpack.c.b16 %v356, %v355
      %v360 = vpack.c.b16 %v358, %v357
      %vm363 = vcmask 261120
      %v365 = vsel %vm363, %v335, 0
      %367 = vmatprep.subr.bf16.mxu0 0
      %368 = vmatpush1.bf16.msra.mxu0 0
      %369 = vmatprep.subr.bf16.mxu0 0
      %370 = vmatpush1.bf16.msra.mxu0 0
      %371 = vmatprep.subr.bf16.mxu0 0
      %372 = vmatpush1.bf16.msra.mxu0 0
      %373 = vmatprep.subr.bf16.mxu0 0
      %374 = vmatpush1.bf16.msra.mxu0 0
      %375 = vmatprep.subr.bf16.mxu0 0
      %376 = vmatpush1.bf16.msra.mxu0 0
      %377 = vmatprep.subr.bf16.mxu0 0
      %378 = vmatpush1.bf16.msra.mxu0 0
      %379 = vmatprep.subr.bf16.mxu0 0
      %380 = vmatpush1.bf16.msra.mxu0 %v360
      %381 = vmatprep.subr.bf16.mxu0 0
      %382 = vmatpush1.bf16.msra.mxu0 %v359
      %383 = vmatprep.subr.bf16.mxu0 0
      %384 = vmatpush2.bf16.msra.mxu0 0
      %385 = vmatprep.subr.bf16.mxu0 0
      %386 = vmatpush2.bf16.msra.mxu0 0
      %387 = vmatprep.subr.bf16.mxu0 0
      %388 = vmatpush2.bf16.msra.mxu0 0
      %389 = vmatprep.subr.bf16.mxu0 0
      %390 = vmatpush2.bf16.msra.mxu0 0
      %391 = vmatprep.subr.bf16.mxu0 0
      %392 = vmatpush2.bf16.msra.mxu0 0
      %393 = vmatprep.subr.bf16.mxu0 0
      %394 = vmatpush2.bf16.msra.mxu0 0
      %395 = vmatprep.subr.bf16.mxu0 0
      %396 = vmatpush2.bf16.msra.mxu0 0
      %397 = vmatprep.subr.bf16.mxu0 0
      %398 = vmatpush2.bf16.msra.mxu0 0
      %399 = vmatprep.mubr.bf16.mxu0 0
      %400 = vmatmul.mubr.bf16.gmra.mxu0 %v365
      %v401 = vpop.f32.mrf.mxu0
      %v402 = vadd.f32 %v349, %v401
      %v403 = vpop.f32.mrf.mxu0
      %v404 = vpop.f32.mrf.mxu0
      %v405 = vpop.f32.mrf.mxu0
      %406 = vdwg.mxu0
      %v407 = vmul.f32 %v402, 0.35355338
      %v408 = vpack.c.bf16 %v407, %v407
      %vm409 = vcmask 60416
      %410 = vst.msk [vmem:[%s309] sm:$0xf] %vm409, %v408
      %v411 = vpack.c.bf16 %v402, %v402
      %v413 = vunpack.c.l.b16 %v411
      %v414 = vpack.c.b16 %v413, %v413
      %415 = vrot.lane.b32.xlu0 %v414, 120
      %v416 = vpop.permute.xlu0 %415
      %418 = vst.msk [vmem:[%s321] sm:$0xf] %vm409, %v416
      %419 = vrot.lane.b32.xlu0 %v414, 112
      %v420 = vpop.permute.xlu0 %419
      %422 = vst.msk [vmem:[%s333] sm:$0xf] %vm409, %v420
      %p423 = scmp.lt.s32.totalorder %s22, 1
      %s424 = scalar_select %p423, %s22, 1
      %p425 = scmp.lt.s32.totalorder %s24, 3
      %s426 = scalar_select %p425, %s24, 3
      %p427 = scmp.lt.s32.totalorder %s23, 1
      %s428 = scalar_select %p427, %s23, 1
      %s429 = smul.addr %s426, 2
      %s430 = sadd.s32 %s428, %s429
      %s431 = smul.addr %s424, 8
      %s432 = sadd.s32 %s430, %s431
      %s433 = smul.addr %s432, 4
      %s434 = scalar_lea.vmem %s3, %s433
      %p435 = scmp.lt.s32.totalorder %s22, 1
      %s436 = scalar_select %p435, %s22, 1
      %p437 = scmp.lt.s32.totalorder %s24, 3
      %s438 = scalar_select %p437, %s24, 3
      %p439 = scmp.lt.s32.totalorder %s23, 1
      %s440 = scalar_select %p439, %s23, 1
      %s441 = smul.addr %s438, 2
      %s442 = sadd.s32 %s440, %s441
      %s443 = smul.addr %s436, 8
      %s444 = sadd.s32 %s442, %s443
      %s445 = smul.addr %s444, 4
      %s446 = scalar_lea.vmem %s4, %s445
      %p447 = scmp.lt.s32.totalorder %s22, 1
      %s448 = scalar_select %p447, %s22, 1
      %p449 = scmp.lt.s32.totalorder %s24, 3
      %s450 = scalar_select %p449, %s24, 3
      %p451 = scmp.lt.s32.totalorder %s23, 1
      %s452 = scalar_select %p451, %s23, 1
      %s453 = smul.addr %s450, 2
      %s454 = sadd.s32 %s452, %s453
      %s455 = smul.addr %s448, 8
      %s456 = sadd.s32 %s454, %s455
      %s457 = smul.addr %s456, 4
      %s458 = scalar_lea.vmem %s5, %s457
      // Predicated region
      $region33: #{tpu_custom_call.1} parent=31 // pred_check
        %p459 = pneg %p128
      $region34: #{tpu_custom_call.1} parent=31 // pred_check_branch
        %461 = sbr.rel (%p459) target = $region36
      $region35: #{tpu_custom_call.1} parent=31 // pred_region
        _
      $region36: #{tpu_custom_call.1} parent=31 // pred_fallthru
        _
      // Predicated region
      $region37: #{tpu_custom_call.1} parent=31 // pred_check
        %p462 = pneg %p158
      $region38: #{tpu_custom_call.1} parent=31 // pred_check_branch
        %464 = sbr.rel (%p462) target = $region40
      $region39: #{tpu_custom_call.1} parent=31 // pred_region
        _
      $region40: #{tpu_custom_call.1} parent=31 // pred_fallthru
        _
      // Predicated region
      $region41: #{tpu_custom_call.1} parent=31 // pred_check
        %p465 = pneg %p188
      $region42: #{tpu_custom_call.1} parent=31 // pred_check_branch
        %467 = sbr.rel (%p465) target = $region44
      $region43: #{tpu_custom_call.1} parent=31 // pred_region
        _
      $region44: #{tpu_custom_call.1} parent=31 // pred_fallthru
        _
    $region32: #{tpu_custom_call.1} parent=5 // pred_fallthru
      _
    %p468 = scmp.le.s32.totalorder 2, %s12
    // Predicated region
    $region45: #{tpu_custom_call.1} parent=5 // pred_check
      %p469 = pneg %p468
    $region46: #{tpu_custom_call.1} parent=5 // pred_check_branch
      %471 = sbr.rel (%p469) target = $region48
    $region47: #{tpu_custom_call.1} parent=5 // pred_region
      %s472 = ssub.s32 %s12, 2
      // Predicated region
      $region49: #{tpu_custom_call.1} parent=47 // pred_check
        %p473 = pneg %p134
      $region50: #{tpu_custom_call.1} parent=47 // pred_check_branch
        %475 = sbr.rel (%p473) target = $region52
      $region51: #{tpu_custom_call.1} parent=47 // pred_region
        %p476 = scmp.lt.s32.totalorder %s25, 1
        %s477 = scalar_select %p476, %s25, 1
        %p478 = scmp.lt.s32.totalorder %s27, 3
        %s479 = scalar_select %p478, %s27, 3
        %p480 = scmp.lt.s32.totalorder %s26, 1
        %s481 = scalar_select %p480, %s26, 1
        %s482 = smul.addr %s479, 2
        %s483 = sadd.s32 %s481, %s482
        %s484 = smul.addr %s477, 8
        %s485 = sadd.s32 %s483, %s484
        %s486 = smul.addr %s485, 4
        %s487 = scalar_lea.vmem %s3, %s486
      $region52: #{tpu_custom_call.1} parent=47 // pred_fallthru
        _
      // Predicated region
      $region53: #{tpu_custom_call.1} parent=47 // pred_check
        %p488 = pneg %p164
      $region54: #{tpu_custom_call.1} parent=47 // pred_check_branch
        %490 = sbr.rel (%p488) target = $region56
      $region55: #{tpu_custom_call.1} parent=47 // pred_region
        %p491 = scmp.lt.s32.totalorder %s25, 1
        %s492 = scalar_select %p491, %s25, 1
        %p493 = scmp.lt.s32.totalorder %s27, 3
        %s494 = scalar_select %p493, %s27, 3
        %p495 = scmp.lt.s32.totalorder %s26, 1
        %s496 = scalar_select %p495, %s26, 1
        %s497 = smul.addr %s494, 2
        %s498 = sadd.s32 %s496, %s497
        %s499 = smul.addr %s492, 8
        %s500 = sadd.s32 %s498, %s499
        %s501 = smul.addr %s500, 4
        %s502 = scalar_lea.vmem %s4, %s501
      $region56: #{tpu_custom_call.1} parent=47 // pred_fallthru
        _
      // Predicated region
      $region57: #{tpu_custom_call.1} parent=47 // pred_check
        %p503 = pneg %p194
      $region58: #{tpu_custom_call.1} parent=47 // pred_check_branch
        %505 = sbr.rel (%p503) target = $region60
      $region59: #{tpu_custom_call.1} parent=47 // pred_region
        %p506 = scmp.lt.s32.totalorder %s25, 1
        %s507 = scalar_select %p506, %s25, 1
        %p508 = scmp.lt.s32.totalorder %s27, 3
        %s509 = scalar_select %p508, %s27, 3
        %p510 = scmp.lt.s32.totalorder %s26, 1
        %s511 = scalar_select %p510, %s26, 1
        %s512 = smul.addr %s509, 2
        %s513 = sadd.s32 %s511, %s512
        %s514 = smul.addr %s507, 8
        %s515 = sadd.s32 %s513, %s514
        %s516 = smul.addr %s515, 4
        %s517 = scalar_lea.vmem %s5, %s516
      $region60: #{tpu_custom_call.1} parent=47 // pred_fallthru
        _
    $region48: #{tpu_custom_call.1} parent=5 // pred_fallthru
      _
  $region6: #{tpu_custom_call.1} parent=0 // loop_footer
    %s16 = sadd.s32 1, %s12
  $region7: #{tpu_custom_call.1} parent=0 // loop_footer_branch
    %11 = sbr.rel target = $region3
  $region8: #{tpu_custom_call.1} parent=0 // loop_exit
    _

</llo_original>
